<compile_context>
chip_gen: v7x
topology: tpu7x:2x2x1
jax: 0.10.0
libtpu: 0.0.40
codegen_flags: <defaults>
</compile_context>

<pallas_src>
import functools

import jax
import jax.numpy as jnp
import numpy as np
from jax.experimental import pallas as pl
from jax.experimental.pallas import tpu as pltpu


# ----------------------------------------------------------------------------
# Kernel
# ----------------------------------------------------------------------------
def _bahdanau_fwd_kernel(q_ref, wq_t_ref, pm_ref, v_ref, lens_ref, out_ref,
                         *, compute_dtype):
    # q_ref:    (Bblk, Q)      query rows for this batch block (f32)
    # wq_t_ref: (Q, Q)         query_layer.weight^T (in, out), shared
    # pm_ref:   (Bblk, Q, S)   projected memory block, S on the lane axis (bf16 stream)
    # v_ref:    (Q, 1)         energy_layer.weight^T, shared
    # lens_ref: (Bblk, 1)      valid lengths (int32) for the prefix mask
    # out_ref:  (Bblk, S)      attention weights, lane-dense in S, sublane-dense in B
    bblk, qdim, s_len = pm_ref.shape

    # Batched query projection for the whole block: one MXU matmul.
    q = q_ref[...].astype(jnp.float32)                                # (Bblk, Q)
    proj_q = jnp.dot(q, wq_t_ref[...].astype(jnp.float32),
                     preferred_element_type=jnp.float32)              # (Bblk, Q)

    # energy = tanh(proj_query + projected_memory), S lane-dense.
    # bf16 add/tanh on bf16-capable chips; f32 on v5-class chips.
    pm = pm_ref[...].astype(compute_dtype)                            # (Bblk, Q, S)
    pq = proj_q.astype(compute_dtype)[:, :, None]                     # (Bblk, Q, 1)
    energy = jnp.tanh(pq + pm)                                        # (Bblk, Q, S)

    # energy_layer(energy): contract Q (sublane reduce, XLU) in f32.
    # Result is already lane-dense: (Bblk, S).
    v_col = v_ref[...].astype(jnp.float32)[None, :, :]                # (1, Q, 1)
    scores = jnp.sum(energy.astype(jnp.float32) * v_col, axis=1)      # (Bblk, S)

    # Prefix pad-mask from per-row lengths: position >= length -> -1000.0.
    pos = jax.lax.broadcasted_iota(jnp.int32, (bblk, s_len), 1)       # (Bblk, S)
    scores = jnp.where(pos < lens_ref[...], scores, jnp.float32(-1000.0))

    # Softmax over S (lane axis); the reciprocal goes to the EUP slot.
    smax = jnp.max(scores, axis=-1, keepdims=True)                    # (Bblk, 1)
    ex = jnp.exp(scores - smax)
    denom = jnp.sum(ex, axis=-1, keepdims=True)                       # (Bblk, 1)
    out_ref[...] = (ex * pl.reciprocal(denom, approx=True)).astype(out_ref.dtype)


# ----------------------------------------------------------------------------
# Generation-aware sizing helpers
# ----------------------------------------------------------------------------
def _device_kind():
    try:
        return jax.devices()[0].device_kind.lower()
    except Exception:
        return ""


def _is_v7(kind):
    return ("v7" in kind) or ("7x" in kind)


def _vmem_capacity_bytes(kind):
    try:
        return int(pltpu.get_tpu_info().vmem_capacity_bytes)
    except Exception:
        # v7x has 64 MiB / TensorCore; v5e / v6e have 128 MiB.
        return (64 << 20) if _is_v7(kind) else (128 << 20)


def _select_compute_dtype(kind):
    # bf16 VPU/EUP exist on v6e and v7x only; keep f32 math elsewhere (v5e...).
    if ("v6" in kind) or _is_v7(kind):
        return jnp.bfloat16
    return jnp.float32


def _pick_b_block(batch, seq, qdim, pm_itemsize, compute_itemsize,
                  *, vmem_budget, multi_core):
    """Largest valid batch-block size whose working set fits `vmem_budget`.

    Valid block sizes are divisors of `batch` that are either == batch or a
    multiple of 8 (Mosaic (8,128) constraint on the second-minor dim of the
    2-D query / lengths / output blocks).  On 2-TensorCore chips (v7x) a block
    <= batch // 2 is preferred so both cores get grid steps.
    """
    s_pad = -(-seq // 128) * 128
    q_pad = -(-qdim // 8) * 8
    # Per batch row (bytes), counting padded VMEM tiles:
    #   pm block (streamed dtype, double-buffered)      : 2 * itemsize * q_pad * s_pad
    #   energy intermediate (compute dtype + f32 upcast): (compute + 4) * q_pad * s_pad
    #   f32 scores / exp / output (double-buffered)     : ~3 * 4 * s_pad
    per_row = (q_pad * s_pad * (2 * pm_itemsize + compute_itemsize + 4)
               + 12 * s_pad + 8 * q_pad)
    fit = max(1, vmem_budget // per_row)

    cands = [d for d in range(1, batch + 1)
             if batch % d == 0 and (d == batch or d % 8 == 0)]
    fitting = [d for d in cands if d <= fit] or [min(cands)]
    if multi_core:
        small = [d for d in fitting if d <= max(1, batch // 2)]
        if small:
            return max(small)
    return max(fitting)


# ----------------------------------------------------------------------------
# Wrapper
# ----------------------------------------------------------------------------
def bahdanau_attention_fwd(query, projected_memory, lengths, wq_weight, v_weight,
                           *, pm_dtype=jnp.bfloat16, compute_dtype=None):
    """Forward pass of BahdanauAttention.

    query:            (1, B, Q)  decoder state, single time step
    projected_memory: (B, S, Q)  memory_layer(memory), any float dtype
    lengths:          (B,)       valid lengths (prefix mask: mask[b, s] = s < lengths[b])
    wq_weight:        (Q, Q)     query_layer.weight (out, in), no bias
    v_weight:         (1, Q)     energy_layer.weight, no bias
    returns           (B, 1, S)  softmax attention weights (float32)

    NOTE: pl.reciprocal(approx=True) means rows sum to 1 only up to ~1e-3
    relative error; masking uses -1000.0 (like the reference), so a length-0
    row yields a uniform distribution.
    """
    t_dim, batch, qdim = query.shape
    assert t_dim == 1, "decoder query is a single time step"
    _, seq, _ = projected_memory.shape
    assert lengths.shape == (batch,)

    kind = _device_kind()
    if compute_dtype is None:
        compute_dtype = _select_compute_dtype(kind)
    vmem_cap = _vmem_capacity_bytes(kind)
    pm_budget = min(vmem_cap // 3, 48 << 20)
    vmem_limit = min(int(vmem_cap * 0.75), 96 << 20)

    # Layout plumbing (all outside the kernel, done once):
    #  * query rows as a dense (B, Q) slab,
    #  * Wq^T so the kernel matmul is (Bblk,Q)x(Q,Q),
    #  * v as a (Q, 1) column (Q already on sublanes),
    #  * projected memory as (B, Q, S): S on the 128-lane axis, streamed bf16,
    #  * lengths as a (B, 1) int32 column for a per-block VMEM load.
    q2 = jnp.transpose(query, (1, 0, 2)).reshape(batch, qdim)
    wq_t = jnp.transpose(wq_weight)
    v_t = jnp.transpose(v_weight)
    pm = jnp.transpose(projected_memory, (0, 2, 1)).astype(pm_dtype)
    lens = lengths.astype(jnp.int32).reshape(batch, 1)

    bblk = _pick_b_block(
        batch, seq, qdim,
        jnp.dtype(pm_dtype).itemsize, jnp.dtype(compute_dtype).itemsize,
        vmem_budget=pm_budget, multi_core=_is_v7(kind))
    grid = (batch // bblk,)

    out2d = pl.pallas_call(
        functools.partial(_bahdanau_fwd_kernel, compute_dtype=compute_dtype),
        out_shape=jax.ShapeDtypeStruct((batch, seq), jnp.float32),
        grid_spec=pltpu.PrefetchScalarGridSpec(
            num_scalar_prefetch=0,
            grid=grid,
            in_specs=[
                pl.BlockSpec((bblk, qdim), lambda b: (b, 0)),          # query rows
                pl.BlockSpec((qdim, qdim), lambda b: (0, 0)),          # Wq^T (shared)
                pl.BlockSpec((bblk, qdim, seq), lambda b: (b, 0, 0)),  # projected mem (B,Q,S)
                pl.BlockSpec((qdim, 1), lambda b: (0, 0)),             # v^T (shared)
                pl.BlockSpec((bblk, 1), lambda b: (b, 0)),             # lengths
            ],
            out_specs=pl.BlockSpec((bblk, seq), lambda b: (b, 0)),
        ),
        compiler_params=pltpu.CompilerParams(
            dimension_semantics=("parallel",),
            vmem_limit_bytes=vmem_limit),
    )(q2, wq_t, pm, v_t, lens)

    # Free relayout outside the kernel: (B, S) -> (B, 1, S) as in the module.
    return out2d[:, None, :]


# ----------------------------------------------------------------------------
# Pure-JAX reference (replica of the PyTorch forward, prefix mask from lengths)
# ----------------------------------------------------------------------------
def _reference(query, projected_memory, lengths, wq_weight, v_weight):
    proj_q = query @ wq_weight.T                           # (1, B, Q)
    proj_q = jnp.transpose(proj_q, (1, 0, 2))              # (B, 1, Q)
    energy = jnp.tanh(proj_q + projected_memory)           # (B, S, Q)
    energy = (energy @ v_weight.T)[..., 0]                 # (B, S)
    seq = projected_memory.shape[1]
    mask = jnp.arange(seq)[None, :] < lengths[:, None]     # == (mask != 0) in PyTorch
    energy = jnp.where(mask, energy, -1000.0)
    energy = jax.nn.softmax(energy, axis=1)
    return energy[:, None, :]                              # (B, 1, S)


if __name__ == "__main__":
    B, S, Q, M = 2, 8, 32, 16

    key = jax.random.PRNGKey(0)
    k1, k2, k3, k4, k5 = jax.random.split(key, 5)

    # Parameter shapes follow nn.Linear: (out, in), no bias.
    wm = jax.random.normal(k1, (Q, M), jnp.float32) * 0.1    # memory_layer.weight
    wq = jax.random.normal(k2, (Q, Q), jnp.float32) * 0.1    # query_layer.weight
    v = jax.random.normal(k3, (1, Q), jnp.float32) * 0.1     # energy_layer.weight

    query = jax.random.normal(k4, (1, B, Q), jnp.float32)    # (T=1, B, Q)
    memory = jax.random.normal(k5, (B, S, M), jnp.float32)   # (B, S, M)
    lengths = jnp.array([S, S - 3], dtype=jnp.int32)         # prefix-mask lengths

    # project_memory() is not part of forward(); in the optimized pipeline the
    # projected memory is stored once in bf16 and streamed as-is by the kernel.
    projected_memory = (memory @ wm.T).astype(jnp.bfloat16)  # (B, S, Q)

    out = bahdanau_attention_fwd(query, projected_memory, lengths, wq, v)
    out = jax.block_until_ready(out)

    # Reference consumes the same bf16-rounded projected memory (upcast to f32).
    # Residual differences come from the bf16 add/tanh (on v6e/v7x), the exp
    # implementation and the approximate EUP reciprocal; tolerance is chosen
    # per compute path.
    ref = _reference(query, projected_memory.astype(jnp.float32), lengths, wq, v)
    cd = _select_compute_dtype(_device_kind())
    atol = 2e-3 if cd == jnp.float32 else 1e-2
    np.testing.assert_allclose(np.asarray(out), np.asarray(ref), atol=atol, rtol=0)
    print("KERNEL_OK")
</pallas_src>

<mosaic_0001>
module attributes {stable_mosaic.version = 11 : i64} {
  func.func @_bahdanau_fwd_kernel(%arg0: i32, %arg1: memref<2x32xf32, #tpu.memory_space<vmem>>, %arg2: memref<32x32xf32, #tpu.memory_space<vmem>>, %arg3: memref<2x32x8xbf16, #tpu.memory_space<vmem>>, %arg4: memref<32x1xf32, #tpu.memory_space<vmem>>, %arg5: memref<2x1xi32, #tpu.memory_space<vmem>>, %arg6: memref<2x8xf32, #tpu.memory_space<vmem>>) attributes {dimension_semantics = [#tpu.dimension_semantics<parallel>], iteration_bounds = array<i64: 1>, scalar_prefetch = 0 : i64, scratch_operands = 0 : i64, tpu.core_type = #tpu.core_type<tc>, window_params = [{transform_indices = @transform_0, window_bounds = array<i64: 2, 32>}, {pipeline_mode = #tpu.pipeline_mode<synchronous>, transform_indices = @transform_1, window_bounds = array<i64: 32, 32>}, {transform_indices = @transform_2, window_bounds = array<i64: 2, 32, 8>}, {pipeline_mode = #tpu.pipeline_mode<synchronous>, transform_indices = @transform_3, window_bounds = array<i64: 32, 1>}, {transform_indices = @transform_4, window_bounds = array<i64: 2, 1>}, {transform_indices = @transform_5, window_bounds = array<i64: 2, 8>}]} {
    %c0 = arith.constant 0 : index
    %c0_0 = arith.constant 0 : index
    %0 = vector.load %arg1[%c0, %c0_0] : memref<2x32xf32, #tpu.memory_space<vmem>>, vector<2x32xf32>
    %c0_1 = arith.constant 0 : index
    %c0_2 = arith.constant 0 : index
    %1 = vector.load %arg2[%c0_1, %c0_2] : memref<32x32xf32, #tpu.memory_space<vmem>>, vector<32x32xf32>
    %cst = arith.constant dense<0.000000e+00> : vector<2x32xf32>
    %2 = tpu.matmul %0, %1, %cst {dimension_numbers = #tpu.dot_dimension_numbers<[1], [0], [0], [1], [0, 0, 1, 1], [], []>} : vector<2x32xf32>, vector<32x32xf32>, vector<2x32xf32> -> vector<2x32xf32>
    %c0_3 = arith.constant 0 : index
    %c0_4 = arith.constant 0 : index
    %c0_5 = arith.constant 0 : index
    %3 = vector.load %arg3[%c0_3, %c0_4, %c0_5] : memref<2x32x8xbf16, #tpu.memory_space<vmem>>, vector<2x32x8xbf16>
    %4 = arith.extf %3 : vector<2x32x8xbf16> to vector<2x32x8xf32>
    %5 = vector.shape_cast %2 : vector<2x32xf32> to vector<2x32x1xf32>
    %6 = vector.broadcast %5 : vector<2x32x1xf32> to vector<2x32x8xf32>
    %7 = arith.addf %6, %4 : vector<2x32x8xf32>
    %8 = math.tanh %7 : vector<2x32x8xf32>
    %c0_6 = arith.constant 0 : index
    %c0_7 = arith.constant 0 : index
    %9 = vector.load %arg4[%c0_6, %c0_7] : memref<32x1xf32, #tpu.memory_space<vmem>>, vector<32x1xf32>
    %10 = vector.shape_cast %9 : vector<32x1xf32> to vector<1x32x1xf32>
    %11 = vector.broadcast %10 : vector<1x32x1xf32> to vector<2x32x8xf32>
    %12 = arith.mulf %8, %11 : vector<2x32x8xf32>
    %cst_8 = arith.constant dense<0.000000e+00> : vector<2x8xf32>
    %13 = vector.multi_reduction <add>, %12, %cst_8 [1] : vector<2x32x8xf32> to vector<2x8xf32>
    %14 = tpu.iota {dimensions = array<i32: 1>} : vector<2x8xi32>
    %c0_9 = arith.constant 0 : index
    %c0_10 = arith.constant 0 : index
    %15 = vector.load %arg5[%c0_9, %c0_10] : memref<2x1xi32, #tpu.memory_space<vmem>>, vector<2x1xi32>
    %16 = vector.broadcast %15 : vector<2x1xi32> to vector<2x8xi32>
    %17 = arith.cmpi slt, %14, %16 : vector<2x8xi32>
    %cst_11 = arith.constant -1.000000e+03 : f32
    %18 = vector.broadcast %cst_11 : f32 to vector<2x8xf32>
    %19 = arith.select %17, %13, %18 : vector<2x8xi1>, vector<2x8xf32>
    %cst_12 = arith.constant dense<0xFF800000> : vector<2xf32>
    %20 = vector.multi_reduction <maximumf>, %19, %cst_12 [1] : vector<2x8xf32> to vector<2xf32>
    %21 = vector.shape_cast %20 : vector<2xf32> to vector<2x1xf32>
    %22 = vector.broadcast %21 : vector<2x1xf32> to vector<2x8xf32>
    %23 = arith.subf %19, %22 : vector<2x8xf32>
    %24 = math.exp %23 : vector<2x8xf32>
    %cst_13 = arith.constant dense<0.000000e+00> : vector<2xf32>
    %25 = vector.multi_reduction <add>, %24, %cst_13 [1] : vector<2x8xf32> to vector<2xf32>
    %26 = vector.shape_cast %25 : vector<2xf32> to vector<2x1xf32>
    %27 = tpu.reciprocal %26 {approx = true} : vector<2x1xf32> -> vector<2x1xf32>
    %28 = vector.broadcast %27 : vector<2x1xf32> to vector<2x8xf32>
    %29 = arith.mulf %24, %28 : vector<2x8xf32>
    %c0_14 = arith.constant 0 : index
    %c0_15 = arith.constant 0 : index
    %30 = vector.load %arg6[%c0_14, %c0_15] : memref<2x8xf32, #tpu.memory_space<vmem>>, vector<2x8xf32>
    tpu.vector_store %arg6[%c0_14, %c0_15], %29 {strides = array<i32>} : memref<2x8xf32, #tpu.memory_space<vmem>>, vector<2x8xf32>,
    return
  }
  func.func @transform_0(%arg0: i32) -> (i32, i32) {
    %c0_i32 = arith.constant 0 : i32
    %c0_i32_0 = arith.constant 0 : i32
    return %arg0, %c0_i32 : i32, i32
  }
  func.func @transform_1(%arg0: i32) -> (i32, i32) {
    %c0_i32 = arith.constant 0 : i32
    %c0_i32_0 = arith.constant 0 : i32
    %c0_i32_1 = arith.constant 0 : i32
    return %c0_i32, %c0_i32_0 : i32, i32
  }
  func.func @transform_2(%arg0: i32) -> (i32, i32, i32) {
    %c0_i32 = arith.constant 0 : i32
    %c0_i32_0 = arith.constant 0 : i32
    %c0_i32_1 = arith.constant 0 : i32
    return %arg0, %c0_i32, %c0_i32_0 : i32, i32, i32
  }
  func.func @transform_3(%arg0: i32) -> (i32, i32) {
    %c0_i32 = arith.constant 0 : i32
    %c0_i32_0 = arith.constant 0 : i32
    %c0_i32_1 = arith.constant 0 : i32
    return %c0_i32, %c0_i32_0 : i32, i32
  }
  func.func @transform_4(%arg0: i32) -> (i32, i32) {
    %c0_i32 = arith.constant 0 : i32
    %c0_i32_0 = arith.constant 0 : i32
    return %arg0, %c0_i32 : i32, i32
  }
  func.func @transform_5(%arg0: i32) -> (i32, i32) {
    %c0_i32 = arith.constant 0 : i32
    %c0_i32_0 = arith.constant 0 : i32
    return %arg0, %c0_i32 : i32, i32
  }
}

</mosaic_0001>

<llo_original>
// kernel: tpu_custom_call.1
$region0: #{tpu_custom_call.1}
  #allocation0 [shape = 'u32[]', space=smem, size = 0x4, offset = 0x4, fixed_abs, tag = 'smem constant byte address 0x4 - core index']
  #allocation1 [shape = 'u32[144,128]{1,0:T(1,128)}', space=vmem, size = 0x12000, scoped, tag = 'internal scratch']
  %s0 = inlined_call_operand.hbm [shape: f32[2,32], index: 0, kind: input, shape index: {}]
  %s1 = inlined_call_operand.hbm [shape: f32[32,32], index: 1, kind: input, shape index: {}]
  %s2 = inlined_call_operand.hbm [shape: bf16[2,32,8], index: 2, kind: input, shape index: {}]
  %s3 = inlined_call_operand.hbm [shape: f32[32,1], index: 3, kind: input, shape index: {}]
  %s4 = inlined_call_operand.hbm [shape: s32[2,1], index: 4, kind: input, shape index: {}]
  %s5 = inlined_call_operand.hbm [shape: f32[2,8], index: 5, kind: output, shape index: {}]
  %s6 = sld [smem:[#allocation0]]
  $region50: #{tpu_custom_call.1} parent=0
    _
  %s8 = ssub.s32 1, %s6
  %s9 = scalar_select 0, %s8, %s6
  $region1: #{tpu_custom_call.1} parent=0
    #allocation2 [shape = 'u8[1024]{0}', space=vmem, size = 0x400, scoped, tag = 'input window, operand 0, single buffered']
    #allocation3 [shape = 's32[1]{0}', space=sflag, size = 0x4, scoped, tag = 'scoped memory for tpu_custom_call.1']
    #allocation4 [shape = 's32[1]{0}', space=sflag, size = 0x4, scoped, tag = 'scoped memory for tpu_custom_call.1']
    #allocation5 [shape = 'u8[16384]{0}', space=vmem, size = 0x4000, scoped, tag = 'input window, operand 1, single buffered']
    #allocation6 [shape = 's32[1]{0}', space=sflag, size = 0x4, scoped, tag = 'scoped memory for tpu_custom_call.1']
    #allocation7 [shape = 'u8[16384]{0}', space=vmem, size = 0x4000, scoped, tag = 'input window, operand 2, single buffered']
    #allocation8 [shape = 'u8[16384]{0}', space=vmem, size = 0x4000, scoped, tag = 'input window, operand 3, single buffered']
    #allocation9 [shape = 's32[1]{0}', space=sflag, size = 0x4, scoped, tag = 'scoped memory for tpu_custom_call.1']
    #allocation10 [shape = 'u8[1024]{0}', space=vmem, size = 0x400, scoped, tag = 'input window, operand 4, single buffered']
    #allocation11 [shape = 'u8[1024]{0}', space=vmem, size = 0x400, scoped, tag = 'output window, operand 0, single buffered']
    %10 = vsyncpa [#allocation3], 0
    %11 = vsyncpa [#allocation6], 0
    %12 = vsyncpa [#allocation9], 0
    %13 = vsyncpa [#allocation4], 0
    // Predicated region
    $region2: #{tpu_custom_call.1} parent=1 // pred_check
      _
    $region3: #{tpu_custom_call.1} parent=1 // pred_check_branch
      %15 = sbr.rel (0) target = $region5
    $region4: #{tpu_custom_call.1} parent=1 // pred_region
      %s17 = ssub.s32 32, 32
      %18 = vsyncadd [#allocation3], %s17
      %s20 = sshll.u32 [#allocation2], 4
      %s21 = int_to_ptr.vmem [resolvable:$true] %s20
      %23 = dma.hbm_to_vmem [thread:$0]  %s0, 32, %s21, [#allocation3]
    $region5: #{tpu_custom_call.1} parent=1 // pred_fallthru
      _
    // Predicated region
    $region6: #{tpu_custom_call.1} parent=1 // pred_check
      _
    $region7: #{tpu_custom_call.1} parent=1 // pred_check_branch
      %25 = sbr.rel (0) target = $region9
    $region8: #{tpu_custom_call.1} parent=1 // pred_region
      %s27 = ssub.s32 512, 512
      %28 = vsyncadd [#allocation6], %s27
      %s29 = sshll.u32 [#allocation5], 4
      %s30 = int_to_ptr.vmem [resolvable:$true] %s29
      %35 = dma.hbm_to_vmem [thread:$0]  %s1, 512, %s30, [#allocation6], 128, 128, 8
    $region9: #{tpu_custom_call.1} parent=1 // pred_fallthru
      _
    // Predicated region
    $region10: #{tpu_custom_call.1} parent=1 // pred_check
      _
    $region11: #{tpu_custom_call.1} parent=1 // pred_check_branch
      %37 = sbr.rel (0) target = $region13
    $region12: #{tpu_custom_call.1} parent=1 // pred_region
      %s39 = ssub.s32 512, 512
      %40 = vsyncadd [#allocation6], %s39
      %s41 = sshll.u32 [#allocation7], 4
      %s42 = int_to_ptr.vmem [resolvable:$true] %s41
      %47 = dma.hbm_to_vmem [thread:$0]  %s2, 512, %s42, [#allocation6], 64, 64, 4
    $region13: #{tpu_custom_call.1} parent=1 // pred_fallthru
      _
    // Predicated region
    $region14: #{tpu_custom_call.1} parent=1 // pred_check
      _
    $region15: #{tpu_custom_call.1} parent=1 // pred_check_branch
      %49 = sbr.rel (0) target = $region17
    $region16: #{tpu_custom_call.1} parent=1 // pred_region
      %s51 = ssub.s32 512, 512
      %52 = vsyncadd [#allocation9], %s51
      %s53 = sshll.u32 [#allocation8], 4
      %s54 = int_to_ptr.vmem [resolvable:$true] %s53
      %59 = dma.hbm_to_vmem [thread:$0]  %s3, 512, %s54, [#allocation9], 128, 128, 8
    $region17: #{tpu_custom_call.1} parent=1 // pred_fallthru
      _
    // Predicated region
    $region18: #{tpu_custom_call.1} parent=1 // pred_check
      _
    $region19: #{tpu_custom_call.1} parent=1 // pred_check_branch
      %61 = sbr.rel (0) target = $region21
    $region20: #{tpu_custom_call.1} parent=1 // pred_region
      %s63 = ssub.s32 32, 32
      %64 = vsyncadd [#allocation9], %s63
      %s66 = sshll.u32 [#allocation10], 4
      %s67 = int_to_ptr.vmem [resolvable:$true] %s66
      %69 = dma.hbm_to_vmem [thread:$0]  %s4, 32, %s67, [#allocation9]
    $region21: #{tpu_custom_call.1} parent=1 // pred_fallthru
      _
    // Predicated region
    $region22: #{tpu_custom_call.1} parent=1 // pred_check
      _
    $region23: #{tpu_custom_call.1} parent=1 // pred_check_branch
      %71 = sbr.rel (0) target = $region25
    $region24: #{tpu_custom_call.1} parent=1 // pred_region
      %72 = dma.done [#allocation3], 32
    $region25: #{tpu_custom_call.1} parent=1 // pred_fallthru
      _
    // Predicated region
    $region26: #{tpu_custom_call.1} parent=1 // pred_check
      _
    $region27: #{tpu_custom_call.1} parent=1 // pred_check_branch
      %74 = sbr.rel (0) target = $region29
    $region28: #{tpu_custom_call.1} parent=1 // pred_region
      %75 = dma.done [#allocation6], 512
    $region29: #{tpu_custom_call.1} parent=1 // pred_fallthru
      _
    // Predicated region
    $region30: #{tpu_custom_call.1} parent=1 // pred_check
      _
    $region31: #{tpu_custom_call.1} parent=1 // pred_check_branch
      %77 = sbr.rel (0) target = $region33
    $region32: #{tpu_custom_call.1} parent=1 // pred_region
      %78 = dma.done [#allocation6], 512
    $region33: #{tpu_custom_call.1} parent=1 // pred_fallthru
      _
    // Predicated region
    $region34: #{tpu_custom_call.1} parent=1 // pred_check
      _
    $region35: #{tpu_custom_call.1} parent=1 // pred_check_branch
      %80 = sbr.rel (0) target = $region37
    $region36: #{tpu_custom_call.1} parent=1 // pred_region
      %81 = dma.done [#allocation9], 512
    $region37: #{tpu_custom_call.1} parent=1 // pred_fallthru
      _
    // Predicated region
    $region38: #{tpu_custom_call.1} parent=1 // pred_check
      _
    $region39: #{tpu_custom_call.1} parent=1 // pred_check_branch
      %83 = sbr.rel (0) target = $region41
    $region40: #{tpu_custom_call.1} parent=1 // pred_region
      %84 = dma.done [#allocation9], 32
    $region41: #{tpu_custom_call.1} parent=1 // pred_fallthru
      _
    %v85 = vld [vmem:[#allocation2] sm:$0x3]
    %v86 = vld [vmem:[#allocation5] sm:$0xff]
    %v87 = vld [vmem:[#allocation5 + $0x8] sm:$0xff]
    %v88 = vld [vmem:[#allocation5 + $0x10] sm:$0xff]
    %v89 = vld [vmem:[#allocation5 + $0x18] sm:$0xff]
    %vm90 = vcmask 261120
    %v92 = vsel %vm90, %v85, 0
    %94 = vmatprep.subr.mxu0 0.0
    %95 = vmatpush1.msra.mxu0 %v86
    %96 = vmatprep.subr.mxu0 0.0
    %97 = vmatpush1.msra.mxu0 %v87
    %98 = vmatprep.subr.mxu0 0.0
    %99 = vmatpush1.msra.mxu0 %v88
    %100 = vmatprep.subr.mxu0 0.0
    %101 = vmatpush1.msra.mxu0 %v89
    %102 = vmatprep.subr.mxu0 0.0
    %103 = vmatpush1.msra.mxu0 0.0
    %104 = vmatprep.subr.mxu0 0.0
    %105 = vmatpush1.msra.mxu0 0.0
    %106 = vmatprep.subr.mxu0 0.0
    %107 = vmatpush1.msra.mxu0 0.0
    %108 = vmatprep.subr.mxu0 0.0
    %109 = vmatpush1.msra.mxu0 0.0
    %110 = vmatprep.subr.mxu0 0.0
    %111 = vmatpush1.msra.mxu0 0.0
    %112 = vmatprep.subr.mxu0 0.0
    %113 = vmatpush1.msra.mxu0 0.0
    %114 = vmatprep.subr.mxu0 0.0
    %115 = vmatpush1.msra.mxu0 0.0
    %116 = vmatprep.subr.mxu0 0.0
    %117 = vmatpush1.msra.mxu0 0.0
    %118 = vmatprep.subr.mxu0 0.0
    %119 = vmatpush1.msra.mxu0 0.0
    %120 = vmatprep.subr.mxu0 0.0
    %121 = vmatpush1.msra.mxu0 0.0
    %122 = vmatprep.subr.mxu0 0.0
    %123 = vmatpush1.msra.mxu0 0.0
    %124 = vmatprep.subr.mxu0 0.0
    %125 = vmatpush1.msra.mxu0 0.0
    %126 = vmatprep.subr.mxu0 0.0
    %127 = vmatpush1.msra.mxu0 0.0
    %128 = vmatprep.subr.mxu0 0.0
    %129 = vmatpush1.msra.mxu0 0.0
    %130 = vmatprep.subr.mxu0 0.0
    %131 = vmatpush1.msra.mxu0 0.0
    %132 = vmatprep.subr.mxu0 0.0
    %133 = vmatpush1.msra.mxu0 0.0
    %134 = vmatprep.subr.mxu0 0.0
    %135 = vmatpush1.msra.mxu0 0.0
    %136 = vmatprep.subr.mxu0 0.0
    %137 = vmatpush1.msra.mxu0 0.0
    %138 = vmatprep.subr.mxu0 0.0
    %139 = vmatpush1.msra.mxu0 0.0
    %140 = vmatprep.subr.mxu0 0.0
    %141 = vmatpush1.msra.mxu0 0.0
    %142 = vmatprep.subr.mxu0 0.0
    %143 = vmatpush1.msra.mxu0 0.0
    %144 = vmatprep.subr.mxu0 0.0
    %145 = vmatpush1.msra.mxu0 0.0
    %146 = vmatprep.subr.mxu0 0.0
    %147 = vmatpush1.msra.mxu0 0.0
    %148 = vmatprep.subr.mxu0 0.0
    %149 = vmatpush1.msra.mxu0 0.0
    %150 = vmatprep.subr.mxu0 0.0
    %151 = vmatpush1.msra.mxu0 0.0
    %152 = vmatprep.subr.mxu0 0.0
    %153 = vmatpush1.msra.mxu0 0.0
    %154 = vmatprep.subr.mxu0 0.0
    %155 = vmatpush1.msra.mxu0 0.0
    %156 = vmatprep.subr.mxu0 0.0
    %157 = vmatpush1.msra.mxu0 0.0
    %158 = vmatprep.mubr.f32.mxu0 0.0
    %159 = vmatmul.mubr.f32.gmra.mrb[0].mxu0 %v92
    %v160 = vpop.f32.mrb[0].mxu0
    %v161 = vadd.f32 0.0, %v160
    %v162 = vpop.f32.mrb[0].mxu0
    %163 = vdwg.mxu0
    %v164 = vld [vmem:[#allocation7] sm:$0xf]
    %v165 = vld [vmem:[#allocation7 + $0x4] sm:$0xf]
    %v166 = vld [vmem:[#allocation7 + $0x8] sm:$0xf]
    %v167 = vld [vmem:[#allocation7 + $0xc] sm:$0xf]
    %v168 = vld [vmem:[#allocation7 + $0x10] sm:$0xf]
    %v169 = vld [vmem:[#allocation7 + $0x14] sm:$0xf]
    %v170 = vld [vmem:[#allocation7 + $0x18] sm:$0xf]
    %v171 = vld [vmem:[#allocation7 + $0x1c] sm:$0xf]
    %v172 = vunpack.c.l.bf16 %v164
    %v173 = vunpack.c.l.bf16 %v165
    %v174 = vunpack.c.l.bf16 %v166
    %v175 = vunpack.c.l.bf16 %v167
    %v176 = vunpack.c.l.bf16 %v168
    %v177 = vunpack.c.l.bf16 %v169
    %v178 = vunpack.c.l.bf16 %v170
    %v179 = vunpack.c.l.bf16 %v171
    %v180 = vlaneseq
    %v181 = vshrl.u32 %v180, 7
    %v182 = vsub.s32 0, %v181
    %v183 = vrot.slane %v161, %v182
    %185 = vbcast.lane.b32.xlu0 %v183, 256
    %v186 = vpop.permute.xlu0 %185
    %s188 = sor.u32 256, 8
    %189 = vbcast.lane.b32.xlu0 %v183, %s188
    %v190 = vpop.permute.xlu0 %189
    %s192 = sor.u32 256, 16
    %193 = vbcast.lane.b32.xlu0 %v183, %s192
    %v194 = vpop.permute.xlu0 %193
    %s196 = sor.u32 256, 24
    %197 = vbcast.lane.b32.xlu0 %v183, %s196
    %v198 = vpop.permute.xlu0 %197
    %v199 = vlaneseq
    %v200 = vshrl.u32 %v199, 7
    %v201 = vsub.s32 1, %v200
    %v202 = vrot.slane %v161, %v201
    %204 = vbcast.lane.b32.xlu0 %v202, 256
    %v205 = vpop.permute.xlu0 %204
    %s207 = sor.u32 256, 8
    %208 = vbcast.lane.b32.xlu0 %v202, %s207
    %v209 = vpop.permute.xlu0 %208
    %s211 = sor.u32 256, 16
    %212 = vbcast.lane.b32.xlu0 %v202, %s211
    %v213 = vpop.permute.xlu0 %212
    %s215 = sor.u32 256, 24
    %216 = vbcast.lane.b32.xlu0 %v202, %s215
    %v217 = vpop.permute.xlu0 %216
    %v218 = vadd.f32 %v186, %v172
    %v219 = vadd.f32 %v190, %v173
    %v220 = vadd.f32 %v194, %v174
    %v221 = vadd.f32 %v198, %v175
    %v222 = vadd.f32 %v205, %v176
    %v223 = vadd.f32 %v209, %v177
    %v224 = vadd.f32 %v213, %v178
    %v225 = vadd.f32 %v217, %v179
    %v226 = vtanh.pop %v218
    %v227 = vtanh.pop %v219
    %v228 = vtanh.pop %v220
    %v229 = vtanh.pop %v221
    %v230 = vtanh.pop %v222
    %v231 = vtanh.pop %v223
    %v232 = vtanh.pop %v224
    %v233 = vtanh.pop %v225
    %v234 = vld [vmem:[#allocation8] sm:$0xff]
    %v235 = vld [vmem:[#allocation8 + $0x8] sm:$0xff]
    %v236 = vld [vmem:[#allocation8 + $0x10] sm:$0xff]
    %v237 = vld [vmem:[#allocation8 + $0x18] sm:$0xff]
    %239 = vset.pattern.permute.xlu0 0
    %240 = vperm.xlu0 %239, %v234
    %v241 = vpop.permute.xlu0 %240
    %244 = vset.pattern.permute.xlu0 0
    %245 = vperm.xlu0 %244, %v235
    %v246 = vpop.permute.xlu0 %245
    %249 = vset.pattern.permute.xlu0 0
    %250 = vperm.xlu0 %249, %v236
    %v251 = vpop.permute.xlu0 %250
    %254 = vset.pattern.permute.xlu0 0
    %255 = vperm.xlu0 %254, %v237
    %v256 = vpop.permute.xlu0 %255
    %v258 = vmul.f32 %v226, %v241
    %v259 = vmul.f32 %v227, %v246
    %v260 = vmul.f32 %v228, %v251
    %v261 = vmul.f32 %v229, %v256
    %v262 = vmul.f32 %v230, %v241
    %v263 = vmul.f32 %v231, %v246
    %v264 = vmul.f32 %v232, %v251
    %v265 = vmul.f32 %v233, %v256
    %vm266 = vcmask 64512
    %v267 = vsel %vm266, %v258, 0.0
    %v268 = vsel %vm266, %v259, 0.0
    %v269 = vadd.f32 %v267, %v268
    %v270 = vsel %vm266, %v260, 0.0
    %v271 = vadd.f32 %v269, %v270
    %v272 = vsel %vm266, %v261, 0.0
    %v273 = vadd.f32 %v271, %v272
    %v274 = vrot.slane %v273, 4
    %v275 = vadd.f32 %v273, %v274
    %v276 = vrot.slane %v275, 2
    %v277 = vadd.f32 %v275, %v276
    %v278 = vrot.slane %v277, 1
    %v279 = vadd.f32 %v277, %v278
    %v280 = vsel %vm266, %v262, 0.0
    %v281 = vsel %vm266, %v263, 0.0
    %v282 = vadd.f32 %v280, %v281
    %v283 = vsel %vm266, %v264, 0.0
    %v284 = vadd.f32 %v282, %v283
    %v285 = vsel %vm266, %v265, 0.0
    %v286 = vadd.f32 %v284, %v285
    %v287 = vrot.slane %v286, 4
    %v288 = vadd.f32 %v286, %v287
    %v289 = vrot.slane %v288, 2
    %v290 = vadd.f32 %v288, %v289
    %v291 = vrot.slane %v290, 1
    %v292 = vadd.f32 %v290, %v291
    %v293 = vlaneseq
    %v294 = vand.u32 %v293, 127
    %v295 = vld [vmem:[#allocation10] sm:$0x3]
    %296 = vset.pattern.permute.xlu0 0
    %297 = vperm.xlu0 %296, %v295
    %v298 = vpop.permute.xlu0 %297
    %vm299 = vcmp.lt.s32.totalorder %v294, %v298
    %vm302 = vcmask 1041409
    %v303 = vsel %vm302, %v292, %v279
    %v305 = vsel %vm299, %v303, -1000.0
    %vm306 = vcmask 58368
    %v307 = vsel %vm306, %v305, -inf
    %308 = vmax.xlane.f32.xlu0 %v307
    %v309 = vpop.xlane.xlu0 %308
    %v310 = vsub.f32 %v305, %v309
    %v311 = vmul.f32 %v310, 1.442695
    %v312 = vpow.pop %v311
    %v313 = vsel %vm306, %v312, 0.0
    %314 = vadd.xlane.f32.xlu0 %v313
    %v315 = vpop.xlane.xlu0 %314
    %v316 = vrcp.pop %v315
    %v317 = vmul.f32 %v312, %v316
    %318 = vst.msk [vmem:[#allocation11] sm:$0x3] %vm306, %v317
    // Predicated region
    $region42: #{tpu_custom_call.1} parent=1 // pred_check
      _
    $region43: #{tpu_custom_call.1} parent=1 // pred_check_branch
      %320 = sbr.rel (0) target = $region45
    $region44: #{tpu_custom_call.1} parent=1 // pred_region
      %s322 = ssub.s32 32, 32
      %323 = vsyncadd [#allocation4], %s322
      %s325 = sshll.u32 [#allocation11], 4
      %s326 = int_to_ptr.vmem [resolvable:$true] %s325
      %328 = dma.vmem_to_hbm [thread:$0]  %s326, 32, %s5, [#allocation4]
    $region45: #{tpu_custom_call.1} parent=1 // pred_fallthru
      _
    // Predicated region
    $region46: #{tpu_custom_call.1} parent=1 // pred_check
      _
    $region47: #{tpu_custom_call.1} parent=1 // pred_check_branch
      %330 = sbr.rel (0) target = $region49
    $region48: #{tpu_custom_call.1} parent=1 // pred_region
      %331 = dma.done [#allocation4], 32
    $region49: #{tpu_custom_call.1} parent=1 // pred_fallthru
      _
    %332 = vsyncpa [#allocation3], 1
    %333 = vsyncpa [#allocation6], 1
    %334 = vsyncpa [#allocation9], 1
    %335 = vsyncpa [#allocation4], 1

</llo_original>
